<compile_context>
chip_gen: v7x
topology: tpu7x:2x2x1
jax: 0.10.0
libtpu: 0.0.40
codegen_flags: <defaults>
</compile_context>

<pallas_src>
import math

import jax
import jax.numpy as jnp
from jax.experimental import pallas as pl
from jax.experimental.pallas import tpu as pltpu


def _v_update_kernel(ab_ref, v_ref, y_ref, o_ref):
    # ab_ref is a (2,) f32 SMEM array: [rho2/(1+rho2), 1/(1+rho2)]
    a = ab_ref[0]
    b = ab_ref[1]
    v = v_ref[...].astype(jnp.float32)
    y = y_ref[...].astype(jnp.float32)
    o_ref[...] = (a * v + b * y).astype(o_ref.dtype)


# Lane widths tried in order (all multiples of 128); first one dividing the aligned
# prefix wins (128 always works since the prefix is 128-aligned by construction).
_LANE_CANDIDATES = (2048, 1024, 512, 256, 128)
# ~4 MiB per block per array: 3 arrays x 2 buffers = 24 MiB, amortizes the ~0.35 us
# per-grid-step overhead to a few percent of the DMA time on v5e/v6e/v7x.
_TARGET_BLOCK_BYTES = 4 * 1024 * 1024
# Explicit scoped-VMEM request: needed on v5e (16 MiB default), harmless on v6e,
# and leaves headroom inside v7x's 64 MiB physical VMEM per TensorCore.
_VMEM_LIMIT_BYTES = 48 * 1024 * 1024
# Below this, fused XLA beats the fixed pallas_call + reshape plumbing cost.
_XLA_FALLBACK_ELEMS = 256 * 1024


def _round_up(x, m):
    return -(-x // m) * m


def _plain_update(v, y, a, b, out_dtype):
    return (a * v.astype(jnp.float32) + b * y.astype(jnp.float32)).astype(out_dtype)


def v_update_gaussian(v_tilde, y, rho2, *, force_pallas=False):
    """Pallas implementation of V_Update_Gaussian.forward.

    v_tilde, y: same-shape arrays (NCHW [B, C, H, W] in the PyTorch module)
    rho2:       scalar penalty parameter (python float or 0-d array)
    returns:    (rho2 * v_tilde + y) / (1 + rho2), same shape, input dtype
    """
    assert v_tilde.shape == y.shape
    orig_shape = v_tilde.shape
    total = math.prod(orig_shape)
    out_dtype = jnp.promote_types(v_tilde.dtype, y.dtype)

    # Fold rho2 into two f32 scalars so the hot loop is one FMA-style op.
    rho2_f = jnp.asarray(rho2, dtype=jnp.float32).reshape(())
    b = 1.0 / (1.0 + rho2_f)
    a = rho2_f * b

    # Tiny inputs: let XLA fuse the elementwise op; pallas overhead dominates here.
    if total < _XLA_FALLBACK_ELEMS and not force_pallas:
        return _plain_update(v_tilde, y, a, b, out_dtype)

    v_flat = jnp.ravel(v_tilde).astype(out_dtype)
    y_flat = jnp.ravel(y).astype(out_dtype)

    # 128-aligned prefix handled by the kernel; the (<128-element) tail by plain jnp.
    main = (total // 128) * 128
    if main == 0:
        return _plain_update(v_tilde, y, a, b, out_dtype)

    for lane in _LANE_CANDIDATES:
        if main % lane == 0:
            break
    rows = main // lane

    itemsize = jnp.dtype(out_dtype).itemsize
    # Sublane packing multiple: 8 for 32-bit, 16 for 16-bit, 32 for 8-bit dtypes.
    sub = max(8, 32 // itemsize)

    # ~4 MiB blocks, rounded to the sublane multiple.
    tile_m_target = max(sub, _TARGET_BLOCK_BYTES // (lane * itemsize))
    tile_m_target = max(sub, (tile_m_target // sub) * sub)

    if rows <= tile_m_target:
        if rows >= 2 * sub:
            # Split into 2 blocks so both v7x TensorCores get work (no-op cost on 1-TC chips).
            tile_m = _round_up(-(-rows // 2), sub)
        else:
            tile_m = rows  # full-extent block: always legal regardless of alignment
    else:
        tile_m = tile_m_target
        grid_m = -(-rows // tile_m)
        if grid_m % 2 == 1:
            # Prefer an even number of grid steps for v7x megacore balance.
            tile_m = _round_up(-(-rows // (grid_m + 1)), sub)
    grid_m = -(-rows // tile_m)  # Pallas masks the partial last block

    v2 = v_flat[:main].reshape(rows, lane)
    y2 = y_flat[:main].reshape(rows, lane)
    ab = jnp.stack([a, b])  # shape (2,), f32, lives in SMEM

    cost = pl.CostEstimate(
        flops=2 * main,
        transcendentals=0,
        bytes_accessed=3 * main * itemsize,
    )

    out2 = pl.pallas_call(
        _v_update_kernel,
        out_shape=jax.ShapeDtypeStruct((rows, lane), out_dtype),
        grid_spec=pltpu.PrefetchScalarGridSpec(
            num_scalar_prefetch=0,
            grid=(grid_m,),
            in_specs=[
                pl.BlockSpec(memory_space=pltpu.SMEM),            # [a, b] scalars
                pl.BlockSpec((tile_m, lane), lambda i: (i, 0)),   # v_tilde slab
                pl.BlockSpec((tile_m, lane), lambda i: (i, 0)),   # y slab
            ],
            out_specs=pl.BlockSpec((tile_m, lane), lambda i: (i, 0)),
        ),
        compiler_params=pltpu.CompilerParams(
            dimension_semantics=("parallel",),
            vmem_limit_bytes=_VMEM_LIMIT_BYTES,
        ),
        cost_estimate=cost,
    )(ab, v2, y2)

    out_flat = out2.reshape(-1)
    if main != total:
        tail = _plain_update(v_flat[main:], y_flat[main:], a, b, out_dtype)
        out_flat = jnp.concatenate([out_flat, tail])
    return out_flat.reshape(orig_shape)


if __name__ == "__main__":
    key = jax.random.PRNGKey(0)
    k1, k2 = jax.random.split(key)

    rho2 = 0.5  # scalar penalty parameter, deterministic

    def ref_fn(v, y):
        return (rho2 * v.astype(jnp.float32) + y.astype(jnp.float32)) / (1.0 + rho2)

    # 1) Module-sized f32 input through the Pallas kernel path.
    B, C, H, W = 2, 4, 16, 16
    v_tilde = jax.random.normal(k1, (B, C, H, W), dtype=jnp.float32)
    y = jax.random.normal(k2, (B, C, H, W), dtype=jnp.float32)
    out = jax.block_until_ready(v_update_gaussian(v_tilde, y, rho2, force_pallas=True))
    assert out.shape == (B, C, H, W) and out.dtype == jnp.float32
    assert jnp.allclose(out, ref_fn(v_tilde, y), atol=1e-5, rtol=1e-5), float(
        jnp.max(jnp.abs(out - ref_fn(v_tilde, y)))
    )

    # 2) Same input through the tiny-input XLA fallback path.
    out_xla = jax.block_until_ready(v_update_gaussian(v_tilde, y, rho2))
    assert jnp.allclose(out_xla, ref_fn(v_tilde, y), atol=1e-5, rtol=1e-5)

    # 3) bf16 input: dtype is preserved end-to-end (no wrapper-side f32 copies).
    v_bf = v_tilde.astype(jnp.bfloat16)
    y_bf = y.astype(jnp.bfloat16)
    out_bf = jax.block_until_ready(v_update_gaussian(v_bf, y_bf, rho2, force_pallas=True))
    assert out_bf.dtype == jnp.bfloat16
    assert jnp.allclose(out_bf.astype(jnp.float32), ref_fn(v_bf, y_bf), atol=2e-2, rtol=2e-2)

    # 4) Shape whose element count is not a multiple of 128: aligned prefix goes through
    #    the kernel, the <128-element tail through plain jnp (no padded copies).
    v_odd = jax.random.normal(k1, (2, 3, 11, 13), dtype=jnp.float32)
    y_odd = jax.random.normal(k2, (2, 3, 11, 13), dtype=jnp.float32)
    out_odd = jax.block_until_ready(v_update_gaussian(v_odd, y_odd, rho2, force_pallas=True))
    assert out_odd.shape == (2, 3, 11, 13)
    assert jnp.allclose(out_odd, ref_fn(v_odd, y_odd), atol=1e-5, rtol=1e-5)

    print("KERNEL_OK")
</pallas_src>

<mosaic_0001>
module attributes {stable_mosaic.version = 11 : i64} {
  func.func @_v_update_kernel(%arg0: i32, %arg1: memref<2xf32, #tpu.memory_space<smem>>, %arg2: memref<1x2048xf32, #tpu.memory_space<vmem>>, %arg3: memref<1x2048xf32, #tpu.memory_space<vmem>>, %arg4: memref<1x2048xf32, #tpu.memory_space<vmem>>) attributes {dimension_semantics = [#tpu.dimension_semantics<parallel>], iteration_bounds = array<i64: 1>, scalar_prefetch = 0 : i64, scratch_operands = 0 : i64, tpu.core_type = #tpu.core_type<tc>, window_params = [{transform_indices = @transform_0, window_bounds = array<i64: 2>}, {transform_indices = @transform_1, window_bounds = array<i64: 1, 2048>}, {transform_indices = @transform_2, window_bounds = array<i64: 1, 2048>}, {transform_indices = @transform_3, window_bounds = array<i64: 1, 2048>}]} {
    %c0 = arith.constant 0 : index
    %0 = memref.load %arg1[%c0] : memref<2xf32, #tpu.memory_space<smem>>
    %c1 = arith.constant 1 : index
    %1 = memref.load %arg1[%c1] : memref<2xf32, #tpu.memory_space<smem>>
    %c0_0 = arith.constant 0 : index
    %c0_1 = arith.constant 0 : index
    %2 = vector.load %arg2[%c0_0, %c0_1] : memref<1x2048xf32, #tpu.memory_space<vmem>>, vector<1x2048xf32>
    %c0_2 = arith.constant 0 : index
    %c0_3 = arith.constant 0 : index
    %3 = vector.load %arg3[%c0_2, %c0_3] : memref<1x2048xf32, #tpu.memory_space<vmem>>, vector<1x2048xf32>
    %4 = vector.broadcast %0 : f32 to vector<1x2048xf32>
    %5 = arith.mulf %4, %2 : vector<1x2048xf32>
    %6 = vector.broadcast %1 : f32 to vector<1x2048xf32>
    %7 = arith.mulf %6, %3 : vector<1x2048xf32>
    %8 = arith.addf %5, %7 : vector<1x2048xf32>
    %c0_4 = arith.constant 0 : index
    %c0_5 = arith.constant 0 : index
    %9 = vector.load %arg4[%c0_4, %c0_5] : memref<1x2048xf32, #tpu.memory_space<vmem>>, vector<1x2048xf32>
    tpu.vector_store %arg4[%c0_4, %c0_5], %8 {strides = array<i32>} : memref<1x2048xf32, #tpu.memory_space<vmem>>, vector<1x2048xf32>,
    return
  }
  func.func @transform_0(%arg0: i32) -> i32 {
    %c0_i32 = arith.constant 0 : i32
    %c0_i32_0 = arith.constant 0 : i32
    return %c0_i32 : i32
  }
  func.func @transform_1(%arg0: i32) -> (i32, i32) {
    %c0_i32 = arith.constant 0 : i32
    %c0_i32_0 = arith.constant 0 : i32
    return %arg0, %c0_i32 : i32, i32
  }
  func.func @transform_2(%arg0: i32) -> (i32, i32) {
    %c0_i32 = arith.constant 0 : i32
    %c0_i32_0 = arith.constant 0 : i32
    return %arg0, %c0_i32 : i32, i32
  }
  func.func @transform_3(%arg0: i32) -> (i32, i32) {
    %c0_i32 = arith.constant 0 : i32
    %c0_i32_0 = arith.constant 0 : i32
    return %arg0, %c0_i32 : i32, i32
  }
}

</mosaic_0001>

<llo_original>
// kernel: tpu_custom_call.1
$region0: #{tpu_custom_call.1}
  #allocation0 [shape = 'u32[]', space=smem, size = 0x4, offset = 0x4, fixed_abs, tag = 'smem constant byte address 0x4 - core index']
  #allocation1 [shape = 'u32[144,128]{1,0:T(1,128)}', space=vmem, size = 0x12000, scoped, tag = 'internal scratch']
  %s0 = inlined_call_operand.hbm [shape: f32[2], index: 0, kind: input, shape index: {}]
  %s1 = inlined_call_operand.hbm [shape: f32[1,2048], index: 1, kind: input, shape index: {}]
  %s2 = inlined_call_operand.hbm [shape: f32[1,2048], index: 2, kind: input, shape index: {}]
  %s3 = inlined_call_operand.hbm [shape: f32[1,2048], index: 3, kind: output, shape index: {}]
  %s4 = sld [smem:[#allocation0]]
  $region34: #{tpu_custom_call.1} parent=0
    _
  %s6 = ssub.s32 1, %s4
  %s7 = scalar_select 0, %s6, %s4
  $region1: #{tpu_custom_call.1} parent=0
    #allocation2 [shape = 'u8[512]{0}', space=smem, size = 0x200, scoped, tag = 'input window, operand 0, single buffered']
    #allocation3 [shape = 's32[1]{0}', space=sflag, size = 0x4, scoped, tag = 'scoped memory for tpu_custom_call.1']
    #allocation4 [shape = 's32[1]{0}', space=sflag, size = 0x4, scoped, tag = 'scoped memory for tpu_custom_call.1']
    #allocation5 [shape = 's32[1]{0}', space=sflag, size = 0x4, scoped, tag = 'scoped memory for tpu_custom_call.1']
    #allocation6 [shape = 'u8[8192]{0}', space=vmem, size = 0x2000, scoped, tag = 'input window, operand 1, single buffered']
    #allocation7 [shape = 'u8[8192]{0}', space=vmem, size = 0x2000, scoped, tag = 'input window, operand 2, single buffered']
    #allocation8 [shape = 's32[1]{0}', space=sflag, size = 0x4, scoped, tag = 'scoped memory for tpu_custom_call.1']
    #allocation9 [shape = 'u8[8192]{0}', space=vmem, size = 0x2000, scoped, tag = 'output window, operand 0, single buffered']
    %8 = vsyncpa [#allocation5], 0
    %9 = vsyncpa [#allocation3], 0
    %10 = vsyncpa [#allocation8], 0
    %11 = vsyncpa [#allocation4], 0
    // Predicated region
    $region2: #{tpu_custom_call.1} parent=1 // pred_check
      _
    $region3: #{tpu_custom_call.1} parent=1 // pred_check_branch
      %13 = sbr.rel (0) target = $region5
    $region4: #{tpu_custom_call.1} parent=1 // pred_region
      %s15 = ssub.s32 16, 16
      %16 = vsyncadd [#allocation5], %s15
      %19 = dma.hbm_to_smem %s0, 16, [#allocation2], [#allocation5]
    $region5: #{tpu_custom_call.1} parent=1 // pred_fallthru
      _
    // Predicated region
    $region6: #{tpu_custom_call.1} parent=1 // pred_check
      _
    $region7: #{tpu_custom_call.1} parent=1 // pred_check_branch
      %21 = sbr.rel (0) target = $region9
    $region8: #{tpu_custom_call.1} parent=1 // pred_region
      %s23 = ssub.s32 256, 256
      %24 = vsyncadd [#allocation3], %s23
      %s26 = sshll.u32 [#allocation6], 4
      %s27 = int_to_ptr.vmem [resolvable:$true] %s26
      %29 = dma.hbm_to_vmem [thread:$0]  %s1, 256, %s27, [#allocation3]
    $region9: #{tpu_custom_call.1} parent=1 // pred_fallthru
      _
    // Predicated region
    $region10: #{tpu_custom_call.1} parent=1 // pred_check
      _
    $region11: #{tpu_custom_call.1} parent=1 // pred_check_branch
      %31 = sbr.rel (0) target = $region13
    $region12: #{tpu_custom_call.1} parent=1 // pred_region
      %s33 = ssub.s32 256, 256
      %34 = vsyncadd [#allocation8], %s33
      %s36 = sshll.u32 [#allocation7], 4
      %s37 = int_to_ptr.vmem [resolvable:$true] %s36
      %39 = dma.hbm_to_vmem [thread:$0]  %s2, 256, %s37, [#allocation8]
    $region13: #{tpu_custom_call.1} parent=1 // pred_fallthru
      _
    // Predicated region
    $region14: #{tpu_custom_call.1} parent=1 // pred_check
      _
    $region15: #{tpu_custom_call.1} parent=1 // pred_check_branch
      %41 = sbr.rel (0) target = $region17
    $region16: #{tpu_custom_call.1} parent=1 // pred_region
      %42 = dma.done [#allocation5], 16
    $region17: #{tpu_custom_call.1} parent=1 // pred_fallthru
      _
    // Predicated region
    $region18: #{tpu_custom_call.1} parent=1 // pred_check
      _
    $region19: #{tpu_custom_call.1} parent=1 // pred_check_branch
      %44 = sbr.rel (0) target = $region21
    $region20: #{tpu_custom_call.1} parent=1 // pred_region
      %45 = dma.done [#allocation3], 256
    $region21: #{tpu_custom_call.1} parent=1 // pred_fallthru
      _
    // Predicated region
    $region22: #{tpu_custom_call.1} parent=1 // pred_check
      _
    $region23: #{tpu_custom_call.1} parent=1 // pred_check_branch
      %47 = sbr.rel (0) target = $region25
    $region24: #{tpu_custom_call.1} parent=1 // pred_region
      %48 = dma.done [#allocation8], 256
    $region25: #{tpu_custom_call.1} parent=1 // pred_fallthru
      _
    %49 = sfence
    %s50 = sld [smem:[#allocation2]]
    %s51 = sld [smem:[#allocation2 + $0x1]]
    %v52 = vld [vmem:[#allocation6] sm:$0xff]
    %v53 = vld [vmem:[#allocation6 + $0x8] sm:$0xff]
    %v54 = vld [vmem:[#allocation7] sm:$0xff]
    %v55 = vld [vmem:[#allocation7 + $0x8] sm:$0xff]
    %v56 = vstv %s50
    %v57 = vmul.f32 %v56, %v52
    %v58 = vmul.f32 %v56, %v53
    %v59 = vstv %s51
    %v60 = vmul.f32 %v59, %v54
    %v61 = vmul.f32 %v59, %v55
    %v62 = vadd.f32 %v57, %v60
    %v63 = vadd.f32 %v58, %v61
    %64 = vst [vmem:[#allocation9] sm:$0xff] %v62
    %65 = vst [vmem:[#allocation9 + $0x8] sm:$0xff] %v63
    // Predicated region
    $region26: #{tpu_custom_call.1} parent=1 // pred_check
      _
    $region27: #{tpu_custom_call.1} parent=1 // pred_check_branch
      %67 = sbr.rel (0) target = $region29
    $region28: #{tpu_custom_call.1} parent=1 // pred_region
      %s69 = ssub.s32 256, 256
      %70 = vsyncadd [#allocation4], %s69
      %s72 = sshll.u32 [#allocation9], 4
      %s73 = int_to_ptr.vmem [resolvable:$true] %s72
      %75 = dma.vmem_to_hbm [thread:$0]  %s73, 256, %s3, [#allocation4]
    $region29: #{tpu_custom_call.1} parent=1 // pred_fallthru
      _
    // Predicated region
    $region30: #{tpu_custom_call.1} parent=1 // pred_check
      _
    $region31: #{tpu_custom_call.1} parent=1 // pred_check_branch
      %77 = sbr.rel (0) target = $region33
    $region32: #{tpu_custom_call.1} parent=1 // pred_region
      %78 = dma.done [#allocation4], 256
    $region33: #{tpu_custom_call.1} parent=1 // pred_fallthru
      _
    %79 = vsyncpa [#allocation3], 1
    %80 = vsyncpa [#allocation8], 1
    %81 = vsyncpa [#allocation4], 1
    %82 = vsyncpa [#allocation5], 1

</llo_original>
